<compile_context>
chip_gen: v7x
topology: tpu7x:2x2x1
jax: 0.10.0
libtpu: 0.0.40
codegen_flags: <defaults>
</compile_context>

<pallas_src>
import functools
import math

import jax
import jax.numpy as jnp
from jax.experimental import pallas as pl
from jax.experimental.pallas import tpu as pltpu

UNITS = 512            # d_model (module-level `units`)
DEFAULT_MAX_LEN = 5000
DEFAULT_DROPOUT = 0.1

MAX_SEQ_TILE = 1024                     # rows; saturates HBM roofline on all gens
VMEM_TILE_BUDGET = 32 * 1024 * 1024     # live double-buffered tile budget (v7x-safe)
VMEM_LIMIT_BYTES = 48 * 1024 * 1024     # scoped VMEM limit (<= 64 MiB physical on v7x)


# ------------------------------------------------------------------ buffer ---

def make_positional_encoding(units, max_len=DEFAULT_MAX_LEN):
    """Same values as the torch register_buffer: shape (max_len, 1, units)."""
    position = jnp.arange(max_len, dtype=jnp.float32)[:, None]             # (L, 1)
    div_term = jnp.exp(
        jnp.arange(0, units, 2, dtype=jnp.float32) * (-math.log(10000.0) / units)
    )                                                                      # (units/2,)
    angles = position * div_term                                           # (L, units/2)
    pe = jnp.zeros((max_len, units), jnp.float32)
    pe = pe.at[:, 0::2].set(jnp.sin(angles))
    pe = pe.at[:, 1::2].set(jnp.cos(angles))
    return pe[:, None, :]                                                  # (L, 1, units)


# ----------------------------------------------------------------- kernels ---

def _broadcast_pe(pe_tile, batch):
    # pe_tile: (tS, D) -> (tS, B*D) matching the contiguous (S, B*D) view of x,
    # i.e. [pe_row | pe_row | ...] along lanes.  D is a multiple of 128, so this
    # is a cheap lane concatenation (pure vreg copies).
    if batch == 1:
        return pe_tile
    return jnp.concatenate([pe_tile] * batch, axis=-1)


def _pe_add_kernel(x_ref, pe_ref, o_ref, *, batch):
    # x block: (tS, B*D); pe block: (tS, D) broadcast over batch along lanes.
    o_ref[...] = (x_ref[...] + _broadcast_pe(pe_ref[...], batch)).astype(o_ref.dtype)


def _pe_add_dropout_kernel(seed_ref, x_ref, pe_ref, o_ref, *, batch,
                           drop_threshold, keep_scale):
    # Fused: y = x + pe, then inverted dropout (zero w.p. p, keep scaled by 1/(1-p)).
    y = x_ref[...] + _broadcast_pe(pe_ref[...], batch)          # (tS, B*D)
    t_s, width = y.shape

    # Stateless counter-based PRNG: murmur3 finalizer of (global element index, seed).
    # Works on TPU and in interpret mode; deterministic and tile-independent.
    row = jax.lax.broadcasted_iota(jnp.int32, (t_s, width), 0).astype(jnp.uint32)
    col = jax.lax.broadcasted_iota(jnp.int32, (t_s, width), 1).astype(jnp.uint32)
    base = pl.program_id(0).astype(jnp.uint32) * jnp.uint32(t_s)
    h = (row + base) * jnp.uint32(width) + col
    h = h + seed_ref[0].astype(jnp.uint32) * jnp.uint32(0x9E3779B9)
    h = h ^ (h >> 16)
    h = h * jnp.uint32(0x85EBCA6B)
    h = h ^ (h >> 13)
    h = h * jnp.uint32(0xC2B2AE35)
    h = h ^ (h >> 16)

    # Integer-threshold compare on the low 24 bits (mask keeps the sign bit out).
    bits24 = (h & jnp.uint32(0xFFFFFF)).astype(jnp.int32)
    keep = bits24 >= drop_threshold                       # P(drop) = threshold / 2^24
    o_ref[...] = jnp.where(keep, y * keep_scale, 0.0).astype(o_ref.dtype)


# ----------------------------------------------------------------- wrapper ---

def _round_up(n, m):
    return ((n + m - 1) // m) * m


def positional_encoding_forward(x, pe, *, dropout_p=DEFAULT_DROPOUT, train=False,
                                seed=0):
    """x: (seq_len, batch, d_model) float32; pe: (max_len, 1, d_model) buffer."""
    S, B, D = x.shape
    max_len = pe.shape[0]
    assert max_len >= S and pe.shape[-1] == D

    # Free, contiguous 2D views: lane/sublane-dense tiles, no HBM copies, no pad.
    x2 = x.reshape(S, B * D)
    pe2 = pe.reshape(max_len, D)        # pass the whole buffer; index_map selects rows
    width = B * D

    # Largest seq tile keeping double-buffered x/out/pe tiles inside the VMEM budget.
    row_bytes = (2 * width + D) * x2.dtype.itemsize
    t_s = (VMEM_TILE_BUDGET // (2 * row_bytes)) // 8 * 8
    t_s = max(8, min(MAX_SEQ_TILE, t_s, _round_up(S, 8)))
    grid = (pl.cdiv(S, t_s),)           # ragged last block masked by Pallas

    out_shape = jax.ShapeDtypeStruct((S, width), x.dtype)
    compiler_params = pltpu.CompilerParams(
        dimension_semantics=("parallel",),        # independent tiles -> both TCs on v7x
        vmem_limit_bytes=VMEM_LIMIT_BYTES,
    )

    if (not train) or dropout_p == 0.0:
        out = pl.pallas_call(
            functools.partial(_pe_add_kernel, batch=B),
            out_shape=out_shape,
            grid_spec=pltpu.PrefetchScalarGridSpec(
                num_scalar_prefetch=0,
                grid=grid,
                in_specs=[pl.BlockSpec((t_s, width), lambda i: (i, 0)),
                          pl.BlockSpec((t_s, D), lambda i: (i, 0))],
                out_specs=pl.BlockSpec((t_s, width), lambda i: (i, 0)),
            ),
            compiler_params=compiler_params,
        )(x2, pe2)
    else:
        kernel = functools.partial(
            _pe_add_dropout_kernel,
            batch=B,
            drop_threshold=int(round(float(dropout_p) * float(1 << 24))),
            keep_scale=1.0 / (1.0 - float(dropout_p)),
        )
        seed_arr = jnp.asarray([seed], dtype=jnp.int32)
        # index_maps receive the scalar-prefetch ref as a trailing positional arg.
        out = pl.pallas_call(
            kernel,
            out_shape=out_shape,
            grid_spec=pltpu.PrefetchScalarGridSpec(
                num_scalar_prefetch=1,
                grid=grid,
                in_specs=[pl.BlockSpec((t_s, width), lambda i, seed_ref: (i, 0)),
                          pl.BlockSpec((t_s, D), lambda i, seed_ref: (i, 0))],
                out_specs=pl.BlockSpec((t_s, width), lambda i, seed_ref: (i, 0)),
            ),
            compiler_params=compiler_params,
        )(seed_arr, x2, pe2)

    return out.reshape(S, B, D)


# -------------------------------------------------------------------- main ---

if __name__ == "__main__":
    key = jax.random.PRNGKey(0)

    S, B, D = 8, 2, UNITS                   # x: [seq_len, batch_size, d_model]
    x = jax.random.normal(key, (S, B, D), jnp.float32)
    pe = make_positional_encoding(D, max_len=DEFAULT_MAX_LEN)   # register_buffer

    # Eval mode: dropout is the identity.
    out = positional_encoding_forward(x, pe, dropout_p=DEFAULT_DROPOUT, train=False)
    jax.block_until_ready(out)
    ref = x + pe[:S]                                            # pure-JAX reference
    assert out.shape == (S, B, D) and out.dtype == jnp.float32
    assert jnp.allclose(out, ref, rtol=1e-5, atol=1e-5)

    # Train mode: inverted dropout (p=0.1) with the stateless in-kernel PRNG.
    p = DEFAULT_DROPOUT
    out_tr = positional_encoding_forward(x, pe, dropout_p=p, train=True, seed=0)
    jax.block_until_ready(out_tr)
    assert out_tr.shape == (S, B, D) and out_tr.dtype == jnp.float32
    keep = out_tr != 0.0
    # Kept elements are exactly (x+pe)/(1-p); dropped elements are exactly 0.
    assert jnp.allclose(out_tr, jnp.where(keep, ref / (1.0 - p), 0.0),
                        rtol=1e-5, atol=1e-5)
    drop_frac = 1.0 - float(jnp.mean(keep.astype(jnp.float32)))
    assert 0.02 <= drop_frac <= 0.25        # ~p over S*B*D = 8192 elements

    print("KERNEL_OK")
</pallas_src>

<mosaic_0001>
module attributes {stable_mosaic.version = 11 : i64} {
  func.func @_pe_add_kernel(%arg0: i32, %arg1: memref<8x1024xf32, #tpu.memory_space<vmem>>, %arg2: memref<8x512xf32, #tpu.memory_space<vmem>>, %arg3: memref<8x1024xf32, #tpu.memory_space<vmem>>) attributes {dimension_semantics = [#tpu.dimension_semantics<parallel>], iteration_bounds = array<i64: 1>, scalar_prefetch = 0 : i64, scratch_operands = 0 : i64, tpu.core_type = #tpu.core_type<tc>, window_params = [{transform_indices = @transform_0, window_bounds = array<i64: 8, 1024>}, {transform_indices = @transform_1, window_bounds = array<i64: 8, 512>}, {transform_indices = @transform_2, window_bounds = array<i64: 8, 1024>}]} {
    %c0 = arith.constant 0 : index
    %c0_0 = arith.constant 0 : index
    %0 = vector.load %arg1[%c0, %c0_0] : memref<8x1024xf32, #tpu.memory_space<vmem>>, vector<8x1024xf32>
    %c0_1 = arith.constant 0 : index
    %c0_2 = arith.constant 0 : index
    %1 = vector.load %arg2[%c0_1, %c0_2] : memref<8x512xf32, #tpu.memory_space<vmem>>, vector<8x512xf32>
    %2 = tpu.concatenate %1, %1 in 1 : vector<8x512xf32>, vector<8x512xf32> -> vector<8x1024xf32>
    %3 = arith.addf %0, %2 : vector<8x1024xf32>
    %c0_3 = arith.constant 0 : index
    %c0_4 = arith.constant 0 : index
    %4 = vector.load %arg3[%c0_3, %c0_4] : memref<8x1024xf32, #tpu.memory_space<vmem>>, vector<8x1024xf32>
    tpu.vector_store %arg3[%c0_3, %c0_4], %3 {strides = array<i32>} : memref<8x1024xf32, #tpu.memory_space<vmem>>, vector<8x1024xf32>,
    return
  }
  func.func @transform_0(%arg0: i32) -> (i32, i32) {
    %c0_i32 = arith.constant 0 : i32
    %c0_i32_0 = arith.constant 0 : i32
    return %arg0, %c0_i32 : i32, i32
  }
  func.func @transform_1(%arg0: i32) -> (i32, i32) {
    %c0_i32 = arith.constant 0 : i32
    %c0_i32_0 = arith.constant 0 : i32
    return %arg0, %c0_i32 : i32, i32
  }
  func.func @transform_2(%arg0: i32) -> (i32, i32) {
    %c0_i32 = arith.constant 0 : i32
    %c0_i32_0 = arith.constant 0 : i32
    return %arg0, %c0_i32 : i32, i32
  }
}

</mosaic_0001>

<llo_original>
// kernel: tpu_custom_call.1
$region0: #{tpu_custom_call.1}
  #allocation0 [shape = 'u32[]', space=smem, size = 0x4, offset = 0x4, fixed_abs, tag = 'smem constant byte address 0x4 - core index']
  #allocation1 [shape = 'u32[144,128]{1,0:T(1,128)}', space=vmem, size = 0x12000, scoped, tag = 'internal scratch']
  %s0 = inlined_call_operand.hbm [shape: f32[8,1024], index: 0, kind: input, shape index: {}]
  %s1 = inlined_call_operand.hbm [shape: f32[5000,512], index: 1, kind: input, shape index: {}]
  %s2 = inlined_call_operand.hbm [shape: f32[8,1024], index: 2, kind: output, shape index: {}]
  %s3 = sld [smem:[#allocation0]]
  $region26: #{tpu_custom_call.1} parent=0
    _
  %s5 = ssub.s32 1, %s3
  %s6 = scalar_select 0, %s5, %s3
  $region1: #{tpu_custom_call.1} parent=0
    #allocation2 [shape = 'u8[32768]{0}', space=vmem, size = 0x8000, scoped, tag = 'input window, operand 0, single buffered']
    #allocation3 [shape = 's32[1]{0}', space=sflag, size = 0x4, scoped, tag = 'scoped memory for tpu_custom_call.1']
    #allocation4 [shape = 's32[1]{0}', space=sflag, size = 0x4, scoped, tag = 'scoped memory for tpu_custom_call.1']
    #allocation5 [shape = 'u8[16384]{0}', space=vmem, size = 0x4000, scoped, tag = 'input window, operand 1, single buffered']
    #allocation6 [shape = 's32[1]{0}', space=sflag, size = 0x4, scoped, tag = 'scoped memory for tpu_custom_call.1']
    #allocation7 [shape = 'u8[32768]{0}', space=vmem, size = 0x8000, scoped, tag = 'output window, operand 0, single buffered']
    %7 = vsyncpa [#allocation3], 0
    %8 = vsyncpa [#allocation6], 0
    %9 = vsyncpa [#allocation4], 0
    // Predicated region
    $region2: #{tpu_custom_call.1} parent=1 // pred_check
      _
    $region3: #{tpu_custom_call.1} parent=1 // pred_check_branch
      %11 = sbr.rel (0) target = $region5
    $region4: #{tpu_custom_call.1} parent=1 // pred_region
      %s13 = ssub.s32 1024, 1024
      %14 = vsyncadd [#allocation3], %s13
      %s16 = sshll.u32 [#allocation2], 4
      %s17 = int_to_ptr.vmem [resolvable:$true] %s16
      %19 = dma.hbm_to_vmem [thread:$0]  %s0, 1024, %s17, [#allocation3]
    $region5: #{tpu_custom_call.1} parent=1 // pred_fallthru
      _
    // Predicated region
    $region6: #{tpu_custom_call.1} parent=1 // pred_check
      _
    $region7: #{tpu_custom_call.1} parent=1 // pred_check_branch
      %21 = sbr.rel (0) target = $region9
    $region8: #{tpu_custom_call.1} parent=1 // pred_region
      %s23 = ssub.s32 512, 512
      %24 = vsyncadd [#allocation6], %s23
      %s26 = sshll.u32 [#allocation5], 4
      %s27 = int_to_ptr.vmem [resolvable:$true] %s26
      %29 = dma.hbm_to_vmem [thread:$0]  %s1, 512, %s27, [#allocation6]
    $region9: #{tpu_custom_call.1} parent=1 // pred_fallthru
      _
    // Predicated region
    $region10: #{tpu_custom_call.1} parent=1 // pred_check
      _
    $region11: #{tpu_custom_call.1} parent=1 // pred_check_branch
      %31 = sbr.rel (0) target = $region13
    $region12: #{tpu_custom_call.1} parent=1 // pred_region
      %32 = dma.done [#allocation3], 1024
    $region13: #{tpu_custom_call.1} parent=1 // pred_fallthru
      _
    // Predicated region
    $region14: #{tpu_custom_call.1} parent=1 // pred_check
      _
    $region15: #{tpu_custom_call.1} parent=1 // pred_check_branch
      %34 = sbr.rel (0) target = $region17
    $region16: #{tpu_custom_call.1} parent=1 // pred_region
      %35 = dma.done [#allocation6], 512
    $region17: #{tpu_custom_call.1} parent=1 // pred_fallthru
      _
    %v36 = vld [vmem:[#allocation2] sm:$0xff]
    %v37 = vld [vmem:[#allocation2 + $0x8] sm:$0xff]
    %v38 = vld [vmem:[#allocation2 + $0x10] sm:$0xff]
    %v39 = vld [vmem:[#allocation2 + $0x18] sm:$0xff]
    %v40 = vld [vmem:[#allocation2 + $0x20] sm:$0xff]
    %v41 = vld [vmem:[#allocation2 + $0x28] sm:$0xff]
    %v42 = vld [vmem:[#allocation2 + $0x30] sm:$0xff]
    %v43 = vld [vmem:[#allocation2 + $0x38] sm:$0xff]
    %v44 = vld [vmem:[#allocation5] sm:$0xff]
    %v45 = vld [vmem:[#allocation5 + $0x8] sm:$0xff]
    %v46 = vld [vmem:[#allocation5 + $0x10] sm:$0xff]
    %v47 = vld [vmem:[#allocation5 + $0x18] sm:$0xff]
    %v48 = vadd.f32 %v36, %v44
    %v49 = vadd.f32 %v37, %v45
    %v50 = vadd.f32 %v38, %v46
    %v51 = vadd.f32 %v39, %v47
    %v52 = vadd.f32 %v40, %v44
    %v53 = vadd.f32 %v41, %v45
    %v54 = vadd.f32 %v42, %v46
    %v55 = vadd.f32 %v43, %v47
    %56 = vst [vmem:[#allocation7] sm:$0xff] %v48
    %57 = vst [vmem:[#allocation7 + $0x8] sm:$0xff] %v49
    %58 = vst [vmem:[#allocation7 + $0x10] sm:$0xff] %v50
    %59 = vst [vmem:[#allocation7 + $0x18] sm:$0xff] %v51
    %60 = vst [vmem:[#allocation7 + $0x20] sm:$0xff] %v52
    %61 = vst [vmem:[#allocation7 + $0x28] sm:$0xff] %v53
    %62 = vst [vmem:[#allocation7 + $0x30] sm:$0xff] %v54
    %63 = vst [vmem:[#allocation7 + $0x38] sm:$0xff] %v55
    // Predicated region
    $region18: #{tpu_custom_call.1} parent=1 // pred_check
      _
    $region19: #{tpu_custom_call.1} parent=1 // pred_check_branch
      %65 = sbr.rel (0) target = $region21
    $region20: #{tpu_custom_call.1} parent=1 // pred_region
      %s67 = ssub.s32 1024, 1024
      %68 = vsyncadd [#allocation4], %s67
      %s70 = sshll.u32 [#allocation7], 4
      %s71 = int_to_ptr.vmem [resolvable:$true] %s70
      %73 = dma.vmem_to_hbm [thread:$0]  %s71, 1024, %s2, [#allocation4]
    $region21: #{tpu_custom_call.1} parent=1 // pred_fallthru
      _
    // Predicated region
    $region22: #{tpu_custom_call.1} parent=1 // pred_check
      _
    $region23: #{tpu_custom_call.1} parent=1 // pred_check_branch
      %75 = sbr.rel (0) target = $region25
    $region24: #{tpu_custom_call.1} parent=1 // pred_region
      %76 = dma.done [#allocation4], 1024
    $region25: #{tpu_custom_call.1} parent=1 // pred_fallthru
      _
    %77 = vsyncpa [#allocation3], 1
    %78 = vsyncpa [#allocation6], 1
    %79 = vsyncpa [#allocation4], 1

</llo_original>
